<compile_context>
chip_gen: v5e
topology: v5e:2x2
jax: 0.10.0
libtpu: 0.0.40
codegen_flags: <defaults>
</compile_context>

<pallas_src>
import functools

import jax
import jax.numpy as jnp
from jax.experimental import pallas as pl
from jax.experimental.pallas import tpu as pltpu


def _layernorm_kernel(x_ref, a_ref, b_ref, o_ref, *, eps, n_features, refine_recip):
    # x_ref: (tile_rows, hidden)   a_ref/b_ref: (1, hidden)
    x = x_ref[...].astype(jnp.float32)
    a = a_ref[...].astype(jnp.float32)
    b = b_ref[...].astype(jnp.float32)

    inv_n = jnp.float32(1.0 / n_features)
    inv_nm1 = jnp.float32(1.0 / (n_features - 1))

    # Fused single-pass statistics: sum and sum-of-squares.
    s1 = jnp.sum(x, axis=-1, keepdims=True)
    s2 = jnp.sum(x * x, axis=-1, keepdims=True)
    mean = s1 * inv_n
    # sum((x - mean)^2) == s2 - s1 * mean ; unbiased variance divides by (N-1).
    var = (s2 - s1 * mean) * inv_nm1
    var = jnp.maximum(var, jnp.float32(0.0))   # guard tiny negative cancellation
    std = jnp.sqrt(var + jnp.float32(eps))
    # NOTE: eps is intentionally applied twice (inside sqrt and added to std)
    # and b really is added to the denominator — this matches the PyTorch module.
    d = std + jnp.float32(eps) + b             # (tile_rows, hidden)

    # EUP approx reciprocal; optional Newton-Raphson refinement for f32 outputs.
    inv_d = pl.reciprocal(d, approx=True)
    if refine_recip:
        inv_d = inv_d * (jnp.float32(2.0) - d * inv_d)

    # Single fused output pass: (x - mean) * a * inv_d, store in native dtype.
    o_ref[...] = ((x - mean) * (a * inv_d)).astype(o_ref.dtype)


def _tpu_info():
    """Best-effort (VMEM capacity per TensorCore, TensorCores sharing the grid)."""
    vmem_capacity = 64 << 20   # conservative default = smallest (v7x per-TC)
    num_tc = 1
    try:
        info = pltpu.get_tpu_info()
        cap = getattr(info, "vmem_capacity_bytes", None)
        if cap:
            vmem_capacity = int(cap)
    except Exception:
        pass
    try:
        kind = jax.devices()[0].device_kind.lower()
        if "v7" in kind:
            num_tc = 2
            vmem_capacity = min(vmem_capacity, 64 << 20)   # 64 MiB per TC on v7x
        elif "v5" in kind or "v6" in kind:
            vmem_capacity = max(vmem_capacity, 128 << 20)  # 128 MiB on v5e/v6e
    except Exception:
        pass
    return vmem_capacity, num_tc


def _pick_tile_rows(rows, n_features, in_itemsize, out_itemsize,
                    vmem_capacity, num_tc):
    """Largest multiple-of-8 row tile whose *total* VMEM footprint fits a budget.

    Footprint per row counted: 2x input double-buffer (native dtype) +
    2x output double-buffer (native dtype) + ~2x f32 block-sized temps from the
    in-kernel upcast / fused elementwise work.
    """
    per_row = n_features * (2 * in_itemsize + 2 * out_itemsize + 2 * 4)
    budget = int(0.60 * vmem_capacity)
    t = budget // max(per_row, 1)
    t = int(max(8, min(2048, (t // 8) * 8)))

    rows_rounded = ((rows + 7) // 8) * 8
    t = min(t, rows_rounded)

    if num_tc > 1:
        # Keep at least 2 steps per TensorCore so megacore sharding has work ...
        while (rows + t - 1) // t < 2 * num_tc and t > 8:
            t = max(8, ((t // 2) // 8) * 8)
        # ... and nudge the step count to a multiple of num_tc for balance.
        steps = (rows + t - 1) // t
        if steps > 1 and steps % num_tc != 0:
            steps_bal = ((steps + num_tc - 1) // num_tc) * num_tc
            t_bal = (((rows + steps_bal - 1) // steps_bal) + 7) // 8 * 8
            if t_bal >= 8:
                t = min(t, max(8, t_bal))
    return t


def layer_norm(x, a, b, eps=1e-6, tile_rows=None):
    """x: (..., num_features); a, b: (num_features,)"""
    orig_shape = x.shape
    n_features = orig_shape[-1]
    if n_features < 2:
        raise ValueError("LayerNorm with unbiased variance requires num_features >= 2")

    rows = 1
    for s in orig_shape[:-1]:
        rows *= s

    x2 = x.reshape(rows, n_features)
    a2 = a.reshape(1, n_features)
    b2 = b.reshape(1, n_features)

    in_itemsize = x2.dtype.itemsize
    out_dtype = x.dtype
    out_itemsize = jnp.dtype(out_dtype).itemsize

    vmem_capacity, num_tc = _tpu_info()

    if tile_rows is None:
        tile_rows = _pick_tile_rows(rows, n_features, in_itemsize, out_itemsize,
                                    vmem_capacity, num_tc)

    grid = ((rows + tile_rows - 1) // tile_rows,)   # ragged last block handled by Pallas

    # VMEM limit: double-buffered native in/out blocks + ~2x f32 temps + headroom,
    # capped at 75% of physical VMEM (48 MiB on v7x, 96 MiB on v5e/v6e).
    block_in = tile_rows * n_features * in_itemsize
    block_out = tile_rows * n_features * out_itemsize
    block_f32 = tile_rows * n_features * 4
    need = 2 * block_in + 2 * block_out + 2 * block_f32 + (4 << 20)
    vmem_limit = int(min(max(need, 32 << 20), int(0.75 * vmem_capacity)))

    # Newton refinement only when the output carries f32 precision.
    refine_recip = jnp.dtype(out_dtype) == jnp.dtype(jnp.float32)

    kernel = functools.partial(_layernorm_kernel, eps=eps, n_features=n_features,
                               refine_recip=refine_recip)

    out = pl.pallas_call(
        kernel,
        out_shape=jax.ShapeDtypeStruct((rows, n_features), out_dtype),
        grid_spec=pltpu.PrefetchScalarGridSpec(
            num_scalar_prefetch=0,
            grid=grid,
            in_specs=[
                pl.BlockSpec((tile_rows, n_features), lambda i: (i, 0)),
                pl.BlockSpec((1, n_features), lambda i: (0, 0)),
                pl.BlockSpec((1, n_features), lambda i: (0, 0)),
            ],
            out_specs=pl.BlockSpec((tile_rows, n_features), lambda i: (i, 0)),
        ),
        compiler_params=pltpu.CompilerParams(
            dimension_semantics=("parallel",),
            vmem_limit_bytes=vmem_limit,
        ),
    )(x2, a2, b2)

    return out.reshape(orig_shape)


def _reference(x, a, b, eps=1e-6):
    x = x.astype(jnp.float32)
    a = a.astype(jnp.float32)
    b = b.astype(jnp.float32)
    mean = jnp.mean(x, axis=-1, keepdims=True)
    xm = x - mean
    var = jnp.sum(xm * xm, axis=-1, keepdims=True) / (x.shape[-1] - 1)
    std = jnp.sqrt(var + eps)
    d = std + eps + b
    return a * xm / d


if __name__ == "__main__":
    key = jax.random.PRNGKey(0)

    # --- main demo: matches the module's default init (a=ones, b=zeros) ------
    batch, seq, hidden = 2, 8, 32
    k0, k1, k2, k3 = jax.random.split(key, 4)
    x = jax.random.normal(k0, (batch, seq, hidden), dtype=jnp.float32)
    a = jnp.ones((hidden,), dtype=jnp.float32)
    b = jnp.zeros((hidden,), dtype=jnp.float32)

    y = layer_norm(x, a, b, eps=1e-6)
    y = jax.block_until_ready(y)
    y_ref = _reference(x, a, b, eps=1e-6)
    assert y.shape == x.shape
    assert jnp.allclose(y, y_ref, atol=1e-4, rtol=1e-4), "mismatch vs reference (default init)"

    # --- stronger check: random a/b (exercises b-in-denominator semantics),
    #     row count NOT a multiple of the tile (ragged last block), lane-dense
    #     hidden (128).
    h2 = 128
    x2 = jax.random.normal(k1, (3, 5, h2), dtype=jnp.float32)
    a2 = 1.0 + 0.1 * jax.random.normal(k2, (h2,), dtype=jnp.float32)
    b2 = 0.05 * jax.random.normal(k3, (h2,), dtype=jnp.float32)

    y2 = jax.block_until_ready(layer_norm(x2, a2, b2, eps=1e-6))
    y2_ref = _reference(x2, a2, b2, eps=1e-6)
    assert y2.shape == x2.shape
    assert jnp.allclose(y2, y2_ref, atol=1e-4, rtol=1e-4), "mismatch vs reference (random a/b)"

    # --- bf16 input path (exercises the f32-intermediate VMEM budgeting and the
    #     no-Newton-refinement branch for sub-f32 outputs).
    x3 = jax.random.normal(k1, (4, 7, h2), dtype=jnp.float32).astype(jnp.bfloat16)
    y3 = jax.block_until_ready(layer_norm(x3, a2, b2, eps=1e-6))
    y3_ref = _reference(x3.astype(jnp.float32), a2, b2, eps=1e-6).astype(jnp.bfloat16)
    assert y3.shape == x3.shape
    assert jnp.allclose(y3.astype(jnp.float32), y3_ref.astype(jnp.float32),
                        atol=2e-2, rtol=2e-2), "mismatch vs reference (bf16)"

    print("KERNEL_OK")
</pallas_src>

<mosaic_0001>
module attributes {stable_mosaic.version = 11 : i64} {
  func.func @_layernorm_kernel(%arg0: i32, %arg1: memref<16x32xf32, #tpu.memory_space<vmem>>, %arg2: memref<1x32xf32, #tpu.memory_space<vmem>>, %arg3: memref<1x32xf32, #tpu.memory_space<vmem>>, %arg4: memref<16x32xf32, #tpu.memory_space<vmem>>) attributes {dimension_semantics = [#tpu.dimension_semantics<parallel>], iteration_bounds = array<i64: 1>, scalar_prefetch = 0 : i64, scratch_operands = 0 : i64, tpu.core_type = #tpu.core_type<tc>, window_params = [{transform_indices = @transform_0, window_bounds = array<i64: 16, 32>}, {pipeline_mode = #tpu.pipeline_mode<synchronous>, transform_indices = @transform_1, window_bounds = array<i64: 1, 32>}, {pipeline_mode = #tpu.pipeline_mode<synchronous>, transform_indices = @transform_2, window_bounds = array<i64: 1, 32>}, {transform_indices = @transform_3, window_bounds = array<i64: 16, 32>}]} {
    %c0 = arith.constant 0 : index
    %c0_0 = arith.constant 0 : index
    %0 = vector.load %arg1[%c0, %c0_0] : memref<16x32xf32, #tpu.memory_space<vmem>>, vector<16x32xf32>
    %c0_1 = arith.constant 0 : index
    %c0_2 = arith.constant 0 : index
    %1 = vector.load %arg2[%c0_1, %c0_2] : memref<1x32xf32, #tpu.memory_space<vmem>>, vector<1x32xf32>
    %c0_3 = arith.constant 0 : index
    %c0_4 = arith.constant 0 : index
    %2 = vector.load %arg3[%c0_3, %c0_4] : memref<1x32xf32, #tpu.memory_space<vmem>>, vector<1x32xf32>
    %cst = arith.constant dense<0.000000e+00> : vector<16xf32>
    %3 = vector.multi_reduction <add>, %0, %cst [1] : vector<16x32xf32> to vector<16xf32>
    %4 = vector.shape_cast %3 : vector<16xf32> to vector<16x1xf32>
    %5 = arith.mulf %0, %0 : vector<16x32xf32>
    %cst_5 = arith.constant dense<0.000000e+00> : vector<16xf32>
    %6 = vector.multi_reduction <add>, %5, %cst_5 [1] : vector<16x32xf32> to vector<16xf32>
    %7 = vector.shape_cast %6 : vector<16xf32> to vector<16x1xf32>
    %cst_6 = arith.constant 3.125000e-02 : f32
    %8 = vector.broadcast %cst_6 : f32 to vector<16x1xf32>
    %9 = arith.mulf %4, %8 : vector<16x1xf32>
    %10 = arith.mulf %4, %9 : vector<16x1xf32>
    %11 = arith.subf %7, %10 : vector<16x1xf32>
    %cst_7 = arith.constant 0.0322580636 : f32
    %12 = vector.broadcast %cst_7 : f32 to vector<16x1xf32>
    %13 = arith.mulf %11, %12 : vector<16x1xf32>
    %cst_8 = arith.constant 0.000000e+00 : f32
    %14 = vector.broadcast %cst_8 : f32 to vector<16x1xf32>
    %15 = arith.maximumf %13, %14 : vector<16x1xf32>
    %cst_9 = arith.constant 9.99999997E-7 : f32
    %16 = vector.broadcast %cst_9 : f32 to vector<16x1xf32>
    %17 = arith.addf %15, %16 : vector<16x1xf32>
    %18 = math.sqrt %17 : vector<16x1xf32>
    %cst_10 = arith.constant 9.99999997E-7 : f32
    %19 = vector.broadcast %cst_10 : f32 to vector<16x1xf32>
    %20 = arith.addf %18, %19 : vector<16x1xf32>
    %21 = vector.broadcast %20 : vector<16x1xf32> to vector<16x32xf32>
    %22 = vector.broadcast %2 : vector<1x32xf32> to vector<16x32xf32>
    %23 = arith.addf %21, %22 : vector<16x32xf32>
    %24 = tpu.reciprocal %23 {approx = true} : vector<16x32xf32> -> vector<16x32xf32>
    %25 = arith.mulf %23, %24 : vector<16x32xf32>
    %cst_11 = arith.constant 2.000000e+00 : f32
    %26 = vector.broadcast %cst_11 : f32 to vector<16x32xf32>
    %27 = arith.subf %26, %25 : vector<16x32xf32>
    %28 = arith.mulf %24, %27 : vector<16x32xf32>
    %29 = vector.broadcast %9 : vector<16x1xf32> to vector<16x32xf32>
    %30 = arith.subf %0, %29 : vector<16x32xf32>
    %31 = vector.broadcast %1 : vector<1x32xf32> to vector<16x32xf32>
    %32 = arith.mulf %31, %28 : vector<16x32xf32>
    %33 = arith.mulf %30, %32 : vector<16x32xf32>
    %c0_12 = arith.constant 0 : index
    %c0_13 = arith.constant 0 : index
    %34 = vector.load %arg4[%c0_12, %c0_13] : memref<16x32xf32, #tpu.memory_space<vmem>>, vector<16x32xf32>
    tpu.vector_store %arg4[%c0_12, %c0_13], %33 {strides = array<i32>} : memref<16x32xf32, #tpu.memory_space<vmem>>, vector<16x32xf32>,
    return
  }
  func.func @transform_0(%arg0: i32) -> (i32, i32) {
    %c0_i32 = arith.constant 0 : i32
    %c0_i32_0 = arith.constant 0 : i32
    return %arg0, %c0_i32 : i32, i32
  }
  func.func @transform_1(%arg0: i32) -> (i32, i32) {
    %c0_i32 = arith.constant 0 : i32
    %c0_i32_0 = arith.constant 0 : i32
    %c0_i32_1 = arith.constant 0 : i32
    return %c0_i32, %c0_i32_0 : i32, i32
  }
  func.func @transform_2(%arg0: i32) -> (i32, i32) {
    %c0_i32 = arith.constant 0 : i32
    %c0_i32_0 = arith.constant 0 : i32
    %c0_i32_1 = arith.constant 0 : i32
    return %c0_i32, %c0_i32_0 : i32, i32
  }
  func.func @transform_3(%arg0: i32) -> (i32, i32) {
    %c0_i32 = arith.constant 0 : i32
    %c0_i32_0 = arith.constant 0 : i32
    return %arg0, %c0_i32 : i32, i32
  }
}

</mosaic_0001>

<llo_original>
// kernel: tpu_custom_call.1
$region0: #{tpu_custom_call.1}
  #allocation0 [shape = 'u32[]', space=smem, size = 0x4, offset = 0x4, fixed_abs, tag = 'smem constant byte address 0x4 - core index']
  #allocation1 [shape = 'u32[72,128]{1,0:T(1,128)}', space=vmem, size = 0x9000, scoped, tag = 'internal scratch']
  %s0 = inlined_call_operand.hbm [shape: f32[16,32], index: 0, kind: input, shape index: {}]
  %s1 = inlined_call_operand.hbm [shape: f32[1,32], index: 1, kind: input, shape index: {}]
  %s2 = inlined_call_operand.vmem [shape: f32[1,32], index: 2, kind: input, shape index: {}]
  %s3 = inlined_call_operand.hbm [shape: f32[16,32], index: 3, kind: output, shape index: {}]
  %s4 = sld [smem:[#allocation0]]
  $region30: #{tpu_custom_call.1} parent=0
    _
  %s6 = ssub.s32 1, %s4
  %s7 = scalar_select 0, %s6, %s4
  $region1: #{tpu_custom_call.1} parent=0
    #allocation2 [shape = 'u8[8192]{0}', space=vmem, size = 0x2000, scoped, tag = 'input window, operand 0, single buffered']
    #allocation3 [shape = 's32[1]{0}', space=sflag, size = 0x4, scoped, tag = 'scoped memory for tpu_custom_call.1']
    #allocation4 [shape = 's32[1]{0}', space=sflag, size = 0x4, scoped, tag = 'scoped memory for tpu_custom_call.1']
    #allocation5 [shape = 'u8[512]{0}', space=vmem, size = 0x400, scoped, tag = 'input window, operand 1, single buffered']
    #allocation6 [shape = 's32[1]{0}', space=sflag, size = 0x4, scoped, tag = 'scoped memory for tpu_custom_call.1']
    #allocation7 [shape = 'u8[8192]{0}', space=vmem, size = 0x2000, scoped, tag = 'output window, operand 0, single buffered']
    %8 = vsyncpa [#allocation3], 0
    %9 = vsyncpa [#allocation6], 0
    %10 = vsyncpa [#allocation4], 0
    // Predicated region
    $region2: #{tpu_custom_call.1} parent=1 // pred_check
      _
    $region3: #{tpu_custom_call.1} parent=1 // pred_check_branch
      %12 = sbr.rel (0) target = $region5
    $region4: #{tpu_custom_call.1} parent=1 // pred_region
      %14 = vsyncadd [#allocation3], 0
      %s15 = sshll.u32 %s0, 4
      %s16 = int_to_ptr.hbm [resolvable:$true] %s15
      %s17 = sshll.u32 [#allocation2], 4
      %s18 = int_to_ptr.vmem [resolvable:$true] %s17
      %23 = dma.hbm_to_vmem [thread:$0]  %s16, 256, %s18, [#allocation3], 128, 128, 8
    $region5: #{tpu_custom_call.1} parent=1 // pred_fallthru
      _
    // Predicated region
    $region6: #{tpu_custom_call.1} parent=1 // pred_check
      _
    $region7: #{tpu_custom_call.1} parent=1 // pred_check_branch
      %25 = sbr.rel (0) target = $region9
    $region8: #{tpu_custom_call.1} parent=1 // pred_region
      %27 = vsyncadd [#allocation6], 0
      %s29 = sshll.u32 %s1, 4
      %s30 = int_to_ptr.hbm [resolvable:$true] %s29
      %s31 = sshll.u32 [#allocation5], 4
      %s32 = int_to_ptr.vmem [resolvable:$true] %s31
      %34 = dma.hbm_to_vmem [thread:$0]  %s30, 16, %s32, [#allocation6]
    $region9: #{tpu_custom_call.1} parent=1 // pred_fallthru
      _
    // Predicated region
    $region10: #{tpu_custom_call.1} parent=1 // pred_check
      _
    $region11: #{tpu_custom_call.1} parent=1 // pred_check_branch
      %36 = sbr.rel (0) target = $region13
    $region12: #{tpu_custom_call.1} parent=1 // pred_region
      _
    $region13: #{tpu_custom_call.1} parent=1 // pred_fallthru
      _
    // Predicated region
    $region14: #{tpu_custom_call.1} parent=1 // pred_check
      _
    $region15: #{tpu_custom_call.1} parent=1 // pred_check_branch
      %38 = sbr.rel (0) target = $region17
    $region16: #{tpu_custom_call.1} parent=1 // pred_region
      %40 = dma.done [#allocation3], 256
    $region17: #{tpu_custom_call.1} parent=1 // pred_fallthru
      _
    // Predicated region
    $region18: #{tpu_custom_call.1} parent=1 // pred_check
      _
    $region19: #{tpu_custom_call.1} parent=1 // pred_check_branch
      %42 = sbr.rel (0) target = $region21
    $region20: #{tpu_custom_call.1} parent=1 // pred_region
      %44 = dma.done [#allocation6], 16
    $region21: #{tpu_custom_call.1} parent=1 // pred_fallthru
      _
    %v45 = vld [vmem:[#allocation2] sm:$0xff]
    %v46 = vld [vmem:[#allocation2 + $0x8] sm:$0xff]
    %v47 = vld [vmem:[#allocation5] sm:$0x1]
    %v48 = vld [vmem:[%s2] sm:$0x1]
    %vm49 = vcmask 261120
    %v50 = vsel %vm49, %v45, 0.0
    %51 = vadd.xlane.f32.xlu0 %v50
    %v52 = vpop.xlane.xlu0 %51
    %v53 = vsel %vm49, %v46, 0.0
    %54 = vadd.xlane.f32.xlu0 %v53
    %v55 = vpop.xlane.xlu0 %54
    %v56 = vmul.f32 %v45, %v45
    %v57 = vmul.f32 %v46, %v46
    %v58 = vsel %vm49, %v56, 0.0
    %59 = vadd.xlane.f32.xlu0 %v58
    %v60 = vpop.xlane.xlu0 %59
    %v61 = vsel %vm49, %v57, 0.0
    %62 = vadd.xlane.f32.xlu0 %v61
    %v63 = vpop.xlane.xlu0 %62
    %v64 = vmul.f32 %v52, 0.03125
    %v65 = vmul.f32 %v55, 0.03125
    %v66 = vmul.f32 %v52, %v64
    %v67 = vmul.f32 %v55, %v65
    %v68 = vsub.f32 %v60, %v66
    %v69 = vsub.f32 %v63, %v67
    %v70 = vmul.f32 %v68, 0.032258064
    %v71 = vmul.f32 %v69, 0.032258064
    %v72 = vmax.f32 %v70, 0.0
    %v73 = vmax.f32 %v71, 0.0
    %v74 = vadd.f32 %v72, 1e-06
    %v75 = vadd.f32 %v73, 1e-06
    %v76 = vrsqrt.pop %v74
    %v77 = vmul.f32 %v76, %v74
    %v78 = vmul.f32 %v77, %v76
    %v79 = vmul.f32 0.5, %v78
    %v80 = vsub.f32 1.5, %v79
    %v81 = vmul.f32 %v76, %v80
    %v82 = vmul.f32 %v74, %v81
    %vm83 = vcmp.eq.f32.partialorder %v74, inf
    %v84 = vsel %vm83, %v74, %v82
    %vm85 = vcmp.eq.f32.partialorder %v74, 0.0
    %v86 = vand.u32 %v74, 2147483648
    %v87 = vsel %vm85, %v86, %v84
    %v88 = vrsqrt.pop %v75
    %v89 = vmul.f32 %v88, %v75
    %v90 = vmul.f32 %v89, %v88
    %v91 = vmul.f32 0.5, %v90
    %v92 = vsub.f32 1.5, %v91
    %v93 = vmul.f32 %v88, %v92
    %v94 = vmul.f32 %v75, %v93
    %vm95 = vcmp.eq.f32.partialorder %v75, inf
    %v96 = vsel %vm95, %v75, %v94
    %vm97 = vcmp.eq.f32.partialorder %v75, 0.0
    %v98 = vand.u32 %v75, 2147483648
    %v99 = vsel %vm97, %v98, %v96
    %v100 = vadd.f32 %v87, 1e-06
    %v101 = vadd.f32 %v99, 1e-06
    %v103 = vperm.slane %v48, 0
    %v105 = vadd.f32 %v100, %v103
    %v106 = vadd.f32 %v101, %v103
    %v107 = vrcp.pop %v105
    %v108 = vrcp.pop %v106
    %v109 = vmul.f32 %v105, %v107
    %v110 = vmul.f32 %v106, %v108
    %v111 = vsub.f32 2.0, %v109
    %v112 = vsub.f32 2.0, %v110
    %v113 = vmul.f32 %v107, %v111
    %v114 = vmul.f32 %v108, %v112
    %v115 = vsub.f32 %v45, %v64
    %v116 = vsub.f32 %v46, %v65
    %v118 = vperm.slane %v47, 0
    %v120 = vmul.f32 %v118, %v113
    %v121 = vmul.f32 %v118, %v114
    %v122 = vmul.f32 %v115, %v120
    %v123 = vmul.f32 %v116, %v121
    %124 = vst.msk [vmem:[#allocation7] sm:$0xff] %vm49, %v122
    %125 = vst.msk [vmem:[#allocation7 + $0x8] sm:$0xff] %vm49, %v123
    // Predicated region
    $region22: #{tpu_custom_call.1} parent=1 // pred_check
      _
    $region23: #{tpu_custom_call.1} parent=1 // pred_check_branch
      %127 = sbr.rel (0) target = $region25
    $region24: #{tpu_custom_call.1} parent=1 // pred_region
      %129 = vsyncadd [#allocation4], 0
      %s130 = sshll.u32 [#allocation7], 4
      %s131 = int_to_ptr.vmem [resolvable:$true] %s130
      %s132 = sshll.u32 %s3, 4
      %s133 = int_to_ptr.hbm [resolvable:$true] %s132
      %138 = dma.vmem_to_hbm [thread:$0]  %s131, 256, %s133, [#allocation4], 128, 128, 8
    $region25: #{tpu_custom_call.1} parent=1 // pred_fallthru
      _
    // Predicated region
    $region26: #{tpu_custom_call.1} parent=1 // pred_check
      _
    $region27: #{tpu_custom_call.1} parent=1 // pred_check_branch
      %140 = sbr.rel (0) target = $region29
    $region28: #{tpu_custom_call.1} parent=1 // pred_region
      %142 = dma.done [#allocation4], 256
    $region29: #{tpu_custom_call.1} parent=1 // pred_fallthru
      _
    %143 = vsyncpa [#allocation3], 1
    %144 = vsyncpa [#allocation6], 1
    %145 = vsyncpa [#allocation4], 1

</llo_original>
